<compile_context>
chip_gen: v7x
topology: tpu7x:2x2x1
jax: 0.10.0
libtpu: 0.0.40
codegen_flags: <defaults>
</compile_context>

<pallas_src>
import functools

import jax
import jax.numpy as jnp
from jax.experimental import pallas as pl
from jax.experimental.pallas import tpu as pltpu

LN_EPS = 1e-5
VMEM_BUDGET_BYTES = 30 * 1024 * 1024  # fits v7x 32 MiB scoped default


def _round_up(x, m):
    return (x + m - 1) // m * m


def _mlp_decoder_kernel(x_ref, w1_ref, lnp_ref, w2_ref, b2_ref, o_ref, acc_ref,
                        *, inv_spatial, inv_embed, true_e, true_spatial,
                        s_tile, need_mask):
    s = pl.program_id(1)

    @pl.when(s == 0)
    def _init():
        acc_ref[...] = jnp.zeros_like(acc_ref)

    # ---- streamed spatial sum (AdaptiveAvgPool numerator) ----
    x = x_ref[...].astype(jnp.float32)                  # (b_tile, C, s_tile)
    if need_mask:
        lane = jax.lax.broadcasted_iota(jnp.int32, x.shape, 2)
        valid = (s * s_tile + lane) < true_spatial
        x = jnp.where(valid, x, 0.0)
    acc_ref[...] += jnp.sum(x, axis=-1)                 # (b_tile, C)

    # ---- MLP epilogue once the spatial reduction is complete ----
    @pl.when(s == pl.num_programs(1) - 1)
    def _epilogue():
        pooled = acc_ref[...] * inv_spatial             # (b_tile, C) == mean

        lnp = lnp_ref[...]                              # (3, E_pad)
        b1 = lnp[0:1, :]
        gamma = lnp[1:2, :]
        beta = lnp[2:3, :]

        # Linear(C -> E)  (E padded to E_pad; padded cols of h are exactly 0)
        h = jnp.dot(pooled, w1_ref[...],
                    preferred_element_type=jnp.float32) + b1

        # LayerNorm over the true E features only (padded h cols are 0, so the
        # plain sum / true_e is the correct mean; variance masks padded cols).
        mu = jnp.sum(h, axis=-1, keepdims=True) * inv_embed
        centered = h - mu
        if true_e != h.shape[-1]:
            e_idx = jax.lax.broadcasted_iota(jnp.int32, h.shape, 1)
            centered = jnp.where(e_idx < true_e, centered, 0.0)
        var = jnp.sum(centered * centered, axis=-1, keepdims=True) * inv_embed
        hn = (h - mu) * jax.lax.rsqrt(var + LN_EPS)
        hn = hn * gamma + beta                          # padded cols -> 0
        hn = jnp.maximum(hn, 0.0)                       # ReLU

        # Linear(E -> F)  (padded rows/cols of w2/b2 are zero)
        out = jnp.dot(hn, w2_ref[...],
                      preferred_element_type=jnp.float32) + b2_ref[...]
        o_ref[...] = out[:, None, :].astype(o_ref.dtype)  # (b_tile, 1, F_pad)


def init_params(key, in_features_channel, embed_dim, num_output_features):
    """PyTorch-equivalent (unpadded) parameters."""
    k1, k2, k3, k4 = jax.random.split(key, 4)
    s1 = 1.0 / jnp.sqrt(in_features_channel)
    s2 = 1.0 / jnp.sqrt(embed_dim)
    return {
        "w1": jax.random.uniform(k1, (in_features_channel, embed_dim),
                                 jnp.float32, -s1, s1),
        "b1": jax.random.uniform(k2, (embed_dim,), jnp.float32, -s1, s1),
        "gamma": jnp.ones((embed_dim,), jnp.float32),
        "beta": jnp.zeros((embed_dim,), jnp.float32),
        "w2": jax.random.uniform(k3, (embed_dim, num_output_features),
                                 jnp.float32, -s2, s2),
        "b2": jax.random.uniform(k4, (num_output_features,),
                                 jnp.float32, -s2, s2),
    }


def prepare_params(params):
    """One-time transform: lane-pad E/F to multiples of 128, fuse b1/gamma/beta."""
    w1, w2 = params["w1"], params["w2"]
    C, E = w1.shape
    F = w2.shape[1]
    E_pad = _round_up(E, 128)
    F_pad = _round_up(F, 128)

    w1_p = jnp.zeros((C, E_pad), jnp.float32).at[:, :E].set(w1)
    lnp = jnp.zeros((3, E_pad), jnp.float32)
    lnp = lnp.at[0, :E].set(params["b1"].reshape(-1))
    lnp = lnp.at[1, :E].set(params["gamma"].reshape(-1))
    lnp = lnp.at[2, :E].set(params["beta"].reshape(-1))
    w2_p = jnp.zeros((E_pad, F_pad), jnp.float32).at[:E, :F].set(w2)
    b2_p = jnp.zeros((1, F_pad), jnp.float32).at[0, :F].set(
        params["b2"].reshape(-1))

    return {"w1": w1_p, "ln": lnp, "w2": w2_p, "b2": b2_p,
            "C": C, "E": E, "F": F, "E_pad": E_pad, "F_pad": F_pad}


def mlp_decoder_forward(neck_features, pparams, *, b_tile=None, s_tile=None,
                        vmem_budget=VMEM_BUDGET_BYTES):
    """neck_features: (B, C, H, W), f32 or bf16 (NCHW like the PyTorch module)."""
    B, C, H, W = neck_features.shape
    S = H * W
    x = neck_features.reshape(B, C, S)

    E, F = pparams["E"], pparams["F"]
    E_pad, F_pad = pparams["E_pad"], pparams["F_pad"]
    assert C == pparams["C"], "channel mismatch between features and params"
    assert F % 3 == 0, "num_output_features must be a multiple of 3"

    itemsize = x.dtype.itemsize
    if b_tile is None:
        b_tile = 8
    b_tile = max(1, min(b_tile, B))

    # Explicit VMEM accounting: double-buffered weights + output + acc scratch,
    # then give the rest to the (double-buffered) x block.
    weight_bytes = 2 * 4 * (C * E_pad + 3 * E_pad + E_pad * F_pad + F_pad)
    fixed_bytes = weight_bytes + 2 * b_tile * F_pad * 4 + b_tile * C * 4
    if s_tile is None:
        remaining = max(vmem_budget - fixed_bytes, 0)
        s_tile = (remaining // (2 * b_tile * C * itemsize)) // 128 * 128
        s_tile = max(128, min(s_tile, _round_up(S, 128)))
    assert s_tile % 128 == 0
    s_tile = min(s_tile, _round_up(S, 128))
    n_b = pl.cdiv(B, b_tile)
    n_s = pl.cdiv(S, s_tile)
    need_mask = (S % s_tile) != 0

    kernel = functools.partial(
        _mlp_decoder_kernel,
        inv_spatial=1.0 / S, inv_embed=1.0 / E, true_e=E,
        true_spatial=S, s_tile=s_tile, need_mask=need_mask)

    flops = int(2 * B * (C * E_pad + E_pad * F_pad) + B * C * S)
    bytes_accessed = int(
        x.size * itemsize
        + (pparams["w1"].size + pparams["ln"].size
           + pparams["w2"].size + pparams["b2"].size) * 4
        + B * F_pad * 4)

    out = pl.pallas_call(
        kernel,
        out_shape=jax.ShapeDtypeStruct((B, 1, F_pad), jnp.float32),
        grid_spec=pltpu.PrefetchScalarGridSpec(
            num_scalar_prefetch=0,
            grid=(n_b, n_s),
            in_specs=[
                pl.BlockSpec((b_tile, C, s_tile), lambda b, s: (b, 0, s)),
                pl.BlockSpec((C, E_pad), lambda b, s: (0, 0)),
                pl.BlockSpec((3, E_pad), lambda b, s: (0, 0)),
                pl.BlockSpec((E_pad, F_pad), lambda b, s: (0, 0)),
                pl.BlockSpec((1, F_pad), lambda b, s: (0, 0)),
            ],
            out_specs=pl.BlockSpec((b_tile, 1, F_pad), lambda b, s: (b, 0, 0)),
            scratch_shapes=[pltpu.VMEM((b_tile, C), jnp.float32)],
        ),
        compiler_params=pltpu.CompilerParams(
            dimension_semantics=("parallel", "arbitrary"),
            vmem_limit_bytes=int(vmem_budget)),
        cost_estimate=pl.CostEstimate(
            flops=flops, transcendentals=2 * B, bytes_accessed=bytes_accessed),
    )(x, pparams["w1"], pparams["ln"], pparams["w2"], pparams["b2"])

    # convert_predictions_to_trajectory: (B, F) -> (B, num_steps, 3).
    pred = out.reshape(B, F_pad)[:, :F]
    traj = pred.reshape(B, F // 3, 3)
    return {"trajectory": traj}


def reference_forward(neck_features, params):
    """Pure-JAX reference (PyTorch semantics) for correctness checking."""
    B, C, H, W = neck_features.shape
    x = neck_features.astype(jnp.float32)
    pooled = x.reshape(B, C, H * W).mean(axis=-1)
    h = pooled @ params["w1"] + params["b1"]
    mu = h.mean(axis=-1, keepdims=True)
    var = ((h - mu) ** 2).mean(axis=-1, keepdims=True)
    h = (h - mu) / jnp.sqrt(var + LN_EPS)
    h = h * params["gamma"] + params["beta"]
    h = jnp.maximum(h, 0.0)
    pred = h @ params["w2"] + params["b2"]
    return pred.reshape(B, -1, 3)


if __name__ == "__main__":
    # batch=2, in_features_channel=16, spatial=16x16, embed_dim=32,
    # num_output_features=48 (16 steps x 3 trajectory dims), num_modes=1.
    B, C, H, W = 2, 16, 16, 16
    embed_dim = 32
    num_output_features = 48

    key = jax.random.PRNGKey(0)
    kx, kp = jax.random.split(key)
    neck_features = jax.random.normal(kx, (B, C, H, W), jnp.float32)
    params = init_params(kp, C, embed_dim, num_output_features)
    pparams = prepare_params(params)

    # f32 path; s_tile=128 forces a real 2-step streamed spatial reduction.
    out = mlp_decoder_forward(neck_features, pparams, s_tile=128)
    traj = jax.block_until_ready(out["trajectory"])
    ref = reference_forward(neck_features, params)
    assert traj.shape == (B, num_output_features // 3, 3)
    assert jnp.allclose(traj, ref, atol=1e-4, rtol=1e-4)

    # bf16 feature path (halves the dominant HBM stream on v6e/v7x); compared
    # against a reference that pools the same bf16-cast features in f32.
    out_bf16 = mlp_decoder_forward(neck_features.astype(jnp.bfloat16),
                                   pparams, s_tile=128)
    traj_bf16 = jax.block_until_ready(out_bf16["trajectory"])
    ref_bf16 = reference_forward(
        neck_features.astype(jnp.bfloat16).astype(jnp.float32), params)
    assert jnp.allclose(traj_bf16, ref_bf16, atol=1e-4, rtol=1e-4)

    # Ragged spatial extent (15x15 = 225) exercises the masked last lane tile.
    nf_odd = jax.random.normal(jax.random.PRNGKey(1), (B, C, 15, 15),
                               jnp.float32)
    out_odd = mlp_decoder_forward(nf_odd, pparams, s_tile=128)
    traj_odd = jax.block_until_ready(out_odd["trajectory"])
    ref_odd = reference_forward(nf_odd, params)
    assert jnp.allclose(traj_odd, ref_odd, atol=1e-4, rtol=1e-4)

    # Ragged batch (B=3 with b_tile=2) exercises the partial batch tile path
    # (garbage rows are row-independent and clipped on output writeback).
    nf_b3 = jax.random.normal(jax.random.PRNGKey(2), (3, C, H, W), jnp.float32)
    out_b3 = mlp_decoder_forward(nf_b3, pparams, b_tile=2, s_tile=128)
    traj_b3 = jax.block_until_ready(out_b3["trajectory"])
    ref_b3 = reference_forward(nf_b3, params)
    assert jnp.allclose(traj_b3, ref_b3, atol=1e-4, rtol=1e-4)

    print("KERNEL_OK")
</pallas_src>

<mosaic_0001>
module attributes {stable_mosaic.version = 11 : i64} {
  func.func @_mlp_decoder_kernel(%arg0: i32, %arg1: i32, %arg2: memref<2x16x128xf32, #tpu.memory_space<vmem>>, %arg3: memref<16x128xf32, #tpu.memory_space<vmem>>, %arg4: memref<3x128xf32, #tpu.memory_space<vmem>>, %arg5: memref<128x128xf32, #tpu.memory_space<vmem>>, %arg6: memref<1x128xf32, #tpu.memory_space<vmem>>, %arg7: memref<2x1x128xf32, #tpu.memory_space<vmem>>, %arg8: memref<2x16xf32, #tpu.memory_space<vmem>>) attributes {dimension_semantics = [#tpu.dimension_semantics<parallel>, #tpu.dimension_semantics<arbitrary>], iteration_bounds = array<i64: 1, 2>, scalar_prefetch = 0 : i64, scratch_operands = 1 : i64, tpu.core_type = #tpu.core_type<tc>, window_params = [{transform_indices = @transform_0, window_bounds = array<i64: 2, 16, 128>}, {pipeline_mode = #tpu.pipeline_mode<synchronous>, transform_indices = @transform_1, window_bounds = array<i64: 16, 128>}, {pipeline_mode = #tpu.pipeline_mode<synchronous>, transform_indices = @transform_2, window_bounds = array<i64: 3, 128>}, {pipeline_mode = #tpu.pipeline_mode<synchronous>, transform_indices = @transform_3, window_bounds = array<i64: 128, 128>}, {pipeline_mode = #tpu.pipeline_mode<synchronous>, transform_indices = @transform_4, window_bounds = array<i64: 1, 128>}, {transform_indices = @transform_5, window_bounds = array<i64: 2, 1, 128>}]} {
    %c0_i32 = arith.constant 0 : i32
    %0 = arith.cmpi eq, %arg1, %c0_i32 : i32
    %1 = arith.extui %0 : i1 to i32
    %c0_i32_0 = arith.constant 0 : i32
    %2 = arith.cmpi ne, %1, %c0_i32_0 : i32
    scf.if %2 {
      %cst_8 = arith.constant 0.000000e+00 : f32
      %11 = vector.broadcast %cst_8 : f32 to vector<2x16xf32>
      %c0_9 = arith.constant 0 : index
      %c0_10 = arith.constant 0 : index
      %12 = vector.load %arg8[%c0_9, %c0_10] : memref<2x16xf32, #tpu.memory_space<vmem>>, vector<2x16xf32>
      tpu.vector_store %arg8[%c0_9, %c0_10], %11 {strides = array<i32>} : memref<2x16xf32, #tpu.memory_space<vmem>>, vector<2x16xf32>,
    } else {
    }
    %c0 = arith.constant 0 : index
    %c0_1 = arith.constant 0 : index
    %c0_2 = arith.constant 0 : index
    %3 = vector.load %arg2[%c0, %c0_1, %c0_2] : memref<2x16x128xf32, #tpu.memory_space<vmem>>, vector<2x16x128xf32>
    %c0_3 = arith.constant 0 : index
    %c0_4 = arith.constant 0 : index
    %4 = vector.load %arg8[%c0_3, %c0_4] : memref<2x16xf32, #tpu.memory_space<vmem>>, vector<2x16xf32>
    %cst = arith.constant dense<0.000000e+00> : vector<2x16xf32>
    %5 = vector.multi_reduction <add>, %3, %cst [2] : vector<2x16x128xf32> to vector<2x16xf32>
    %6 = arith.addf %4, %5 : vector<2x16xf32>
    %c0_5 = arith.constant 0 : index
    %c0_6 = arith.constant 0 : index
    %7 = vector.load %arg8[%c0_5, %c0_6] : memref<2x16xf32, #tpu.memory_space<vmem>>, vector<2x16xf32>
    tpu.vector_store %arg8[%c0_5, %c0_6], %6 {strides = array<i32>} : memref<2x16xf32, #tpu.memory_space<vmem>>, vector<2x16xf32>,
    %c1_i32 = arith.constant 1 : i32
    %8 = arith.cmpi eq, %arg1, %c1_i32 : i32
    %9 = arith.extui %8 : i1 to i32
    %c0_i32_7 = arith.constant 0 : i32
    %10 = arith.cmpi ne, %9, %c0_i32_7 : i32
    scf.if %10 {
      %c0_8 = arith.constant 0 : index
      %c0_9 = arith.constant 0 : index
      %11 = vector.load %arg8[%c0_8, %c0_9] : memref<2x16xf32, #tpu.memory_space<vmem>>, vector<2x16xf32>
      %cst_10 = arith.constant 3.906250e-03 : f32
      %12 = vector.broadcast %cst_10 : f32 to vector<2x16xf32>
      %13 = arith.mulf %11, %12 : vector<2x16xf32>
      %c0_11 = arith.constant 0 : index
      %c0_12 = arith.constant 0 : index
      %14 = vector.load %arg4[%c0_11, %c0_12] : memref<3x128xf32, #tpu.memory_space<vmem>>, vector<3x128xf32>
      %15 = vector.extract_strided_slice %14 {offsets = [0, 0], sizes = [1, 128], strides = [1, 1]} : vector<3x128xf32> to vector<1x128xf32>
      %16 = vector.extract_strided_slice %14 {offsets = [1, 0], sizes = [1, 128], strides = [1, 1]} : vector<3x128xf32> to vector<1x128xf32>
      %17 = vector.extract_strided_slice %14 {offsets = [2, 0], sizes = [1, 128], strides = [1, 1]} : vector<3x128xf32> to vector<1x128xf32>
      %c0_13 = arith.constant 0 : index
      %c0_14 = arith.constant 0 : index
      %18 = vector.load %arg3[%c0_13, %c0_14] : memref<16x128xf32, #tpu.memory_space<vmem>>, vector<16x128xf32>
      %cst_15 = arith.constant dense<0.000000e+00> : vector<2x128xf32>
      %19 = tpu.matmul %13, %18, %cst_15 {dimension_numbers = #tpu.dot_dimension_numbers<[1], [0], [0], [1], [0, 0, 1, 1], [], []>} : vector<2x16xf32>, vector<16x128xf32>, vector<2x128xf32> -> vector<2x128xf32>
      %20 = vector.broadcast %15 : vector<1x128xf32> to vector<2x128xf32>
      %21 = arith.addf %19, %20 : vector<2x128xf32>
      %cst_16 = arith.constant dense<0.000000e+00> : vector<2xf32>
      %22 = vector.multi_reduction <add>, %21, %cst_16 [1] : vector<2x128xf32> to vector<2xf32>
      %23 = vector.shape_cast %22 : vector<2xf32> to vector<2x1xf32>
      %cst_17 = arith.constant 3.125000e-02 : f32
      %24 = vector.broadcast %cst_17 : f32 to vector<2x1xf32>
      %25 = arith.mulf %23, %24 : vector<2x1xf32>
      %26 = vector.broadcast %25 : vector<2x1xf32> to vector<2x128xf32>
      %27 = arith.subf %21, %26 : vector<2x128xf32>
      %28 = tpu.iota {dimensions = array<i32: 1>} : vector<2x128xi32>
      %c32_i32 = arith.constant 32 : i32
      %29 = vector.broadcast %c32_i32 : i32 to vector<2x128xi32>
      %30 = arith.cmpi slt, %28, %29 : vector<2x128xi32>
      %cst_18 = arith.constant 0.000000e+00 : f32
      %31 = vector.broadcast %cst_18 : f32 to vector<2x128xf32>
      %32 = arith.select %30, %27, %31 : vector<2x128xi1>, vector<2x128xf32>
      %33 = arith.mulf %32, %32 : vector<2x128xf32>
      %cst_19 = arith.constant dense<0.000000e+00> : vector<2xf32>
      %34 = vector.multi_reduction <add>, %33, %cst_19 [1] : vector<2x128xf32> to vector<2xf32>
      %35 = vector.shape_cast %34 : vector<2xf32> to vector<2x1xf32>
      %cst_20 = arith.constant 3.125000e-02 : f32
      %36 = vector.broadcast %cst_20 : f32 to vector<2x1xf32>
      %37 = arith.mulf %35, %36 : vector<2x1xf32>
      %38 = vector.broadcast %25 : vector<2x1xf32> to vector<2x128xf32>
      %39 = arith.subf %21, %38 : vector<2x128xf32>
      %cst_21 = arith.constant 9.99999974E-6 : f32
      %40 = vector.broadcast %cst_21 : f32 to vector<2x1xf32>
      %41 = arith.addf %37, %40 : vector<2x1xf32>
      %42 = math.rsqrt %41 : vector<2x1xf32>
      %43 = vector.broadcast %42 : vector<2x1xf32> to vector<2x128xf32>
      %44 = arith.mulf %39, %43 : vector<2x128xf32>
      %45 = vector.broadcast %16 : vector<1x128xf32> to vector<2x128xf32>
      %46 = arith.mulf %44, %45 : vector<2x128xf32>
      %47 = vector.broadcast %17 : vector<1x128xf32> to vector<2x128xf32>
      %48 = arith.addf %46, %47 : vector<2x128xf32>
      %cst_22 = arith.constant 0.000000e+00 : f32
      %49 = vector.broadcast %cst_22 : f32 to vector<2x128xf32>
      %50 = arith.maximumf %48, %49 : vector<2x128xf32>
      %c0_23 = arith.constant 0 : index
      %c0_24 = arith.constant 0 : index
      %51 = vector.load %arg5[%c0_23, %c0_24] : memref<128x128xf32, #tpu.memory_space<vmem>>, vector<128x128xf32>
      %cst_25 = arith.constant dense<0.000000e+00> : vector<2x128xf32>
      %52 = tpu.matmul %50, %51, %cst_25 {dimension_numbers = #tpu.dot_dimension_numbers<[1], [0], [0], [1], [0, 0, 1, 1], [], []>} : vector<2x128xf32>, vector<128x128xf32>, vector<2x128xf32> -> vector<2x128xf32>
      %c0_26 = arith.constant 0 : index
      %c0_27 = arith.constant 0 : index
      %53 = vector.load %arg6[%c0_26, %c0_27] : memref<1x128xf32, #tpu.memory_space<vmem>>, vector<1x128xf32>
      %54 = vector.broadcast %53 : vector<1x128xf32> to vector<2x128xf32>
      %55 = arith.addf %52, %54 : vector<2x128xf32>
      %56 = vector.shape_cast %55 : vector<2x128xf32> to vector<2x1x128xf32>
      %c0_28 = arith.constant 0 : index
      %c0_29 = arith.constant 0 : index
      %c0_30 = arith.constant 0 : index
      %57 = vector.load %arg7[%c0_28, %c0_29, %c0_30] : memref<2x1x128xf32, #tpu.memory_space<vmem>>, vector<2x1x128xf32>
      tpu.vector_store %arg7[%c0_28, %c0_29, %c0_30], %56 {strides = array<i32>} : memref<2x1x128xf32, #tpu.memory_space<vmem>>, vector<2x1x128xf32>,
    } else {
    }
    return
  }
  func.func @transform_0(%arg0: i32, %arg1: i32) -> (i32, i32, i32) {
    %c0_i32 = arith.constant 0 : i32
    %c0_i32_0 = arith.constant 0 : i32
    return %arg0, %c0_i32, %arg1 : i32, i32, i32
  }
  func.func @transform_1(%arg0: i32, %arg1: i32) -> (i32, i32) {
    %c0_i32 = arith.constant 0 : i32
    %c0_i32_0 = arith.constant 0 : i32
    %c0_i32_1 = arith.constant 0 : i32
    return %c0_i32, %c0_i32_0 : i32, i32
  }
  func.func @transform_2(%arg0: i32, %arg1: i32) -> (i32, i32) {
    %c0_i32 = arith.constant 0 : i32
    %c0_i32_0 = arith.constant 0 : i32
    %c0_i32_1 = arith.constant 0 : i32
    return %c0_i32, %c0_i32_0 : i32, i32
  }
  func.func @transform_3(%arg0: i32, %arg1: i32) -> (i32, i32) {
    %c0_i32 = arith.constant 0 : i32
    %c0_i32_0 = arith.constant 0 : i32
    %c0_i32_1 = arith.constant 0 : i32
    return %c0_i32, %c0_i32_0 : i32, i32
  }
  func.func @transform_4(%arg0: i32, %arg1: i32) -> (i32, i32) {
    %c0_i32 = arith.constant 0 : i32
    %c0_i32_0 = arith.constant 0 : i32
    %c0_i32_1 = arith.constant 0 : i32
    return %c0_i32, %c0_i32_0 : i32, i32
  }
  func.func @transform_5(%arg0: i32, %arg1: i32) -> (i32, i32, i32) {
    %c0_i32 = arith.constant 0 : i32
    %c0_i32_0 = arith.constant 0 : i32
    %c0_i32_1 = arith.constant 0 : i32
    return %arg0, %c0_i32, %c0_i32_0 : i32, i32, i32
  }
}

</mosaic_0001>

<llo_original>
// kernel: tpu_custom_call.1
$region0: #{tpu_custom_call.1}
  #allocation0 [shape = 'u32[]', space=smem, size = 0x4, offset = 0x4, fixed_abs, tag = 'smem constant byte address 0x4 - core index']
  #allocation1 [shape = 'u32[144,128]{1,0:T(1,128)}', space=vmem, size = 0x12000, scoped, tag = 'internal scratch']
  #allocation2 [shape = 'f32[2,16]{1,0:T(2,128)}', space=vmem, size = 0x400, scoped, tag = 'scratch operand']
  %s0 = inlined_call_operand.hbm [shape: f32[2,16,256], index: 0, kind: input, shape index: {}]
  %s1 = inlined_call_operand.hbm [shape: f32[16,128], index: 1, kind: input, shape index: {}]
  %s2 = inlined_call_operand.vmem [shape: f32[3,128], index: 2, kind: input, shape index: {}]
  %s3 = inlined_call_operand.hbm [shape: f32[128,128], index: 3, kind: input, shape index: {}]
  %s4 = inlined_call_operand.vmem [shape: f32[1,128], index: 4, kind: input, shape index: {}]
  %s5 = inlined_call_operand.hbm [shape: f32[2,1,128], index: 5, kind: output, shape index: {}]
  %s6 = sld [smem:[#allocation0]]
  $region73: #{tpu_custom_call.1} parent=0
    _
  %s8 = ssub.s32 1, %s6
  %s9 = scalar_select 0, %s8, %s6
  $region1: #{tpu_custom_call.1} parent=0
    #allocation3 [shape = 'u8[32768]{0}', space=vmem, size = 0x8000, scoped, tag = 'input window, operand 0']
    #allocation4 [shape = 's32[2]{0}', space=sflag, size = 0x8, scoped, tag = 'scoped memory for tpu_custom_call.1']
    #allocation5 [shape = 's32[2]{0}', space=sflag, size = 0x8, scoped, tag = 'scoped memory for tpu_custom_call.1']
    #allocation6 [shape = 'u8[8192]{0}', space=vmem, size = 0x2000, scoped, tag = 'input window, operand 1, single buffered']
    #allocation7 [shape = 's32[1]{0}', space=sflag, size = 0x4, scoped, tag = 'scoped memory for tpu_custom_call.1']
    #allocation8 [shape = 'u8[65536]{0}', space=vmem, size = 0x10000, scoped, tag = 'input window, operand 3, single buffered']
    #allocation9 [shape = 'u8[1024]{0}', space=vmem, size = 0x400, scoped, tag = 'output window, operand 0, single buffered']
    %10 = vsyncpa [#allocation4], 0
    %s11 = scalar_lea.sflag [#allocation4], 1
    %12 = vsyncpa %s11, 0
    %13 = vsyncpa [#allocation7], 0
    %14 = vsyncpa [#allocation5], 0
    loop: start=0, step=1, limit=4
    $region2: #{tpu_custom_call.1} parent=1 // loop_pre_header
      _
    $region3: #{tpu_custom_call.1} parent=1 // loop_header
      %s16 = sphi 0, %s20
      %p17 = scmp.ge.s32.totalorder %s16, 4
      %s23 = sphi 0, %s35
      %s24 = sphi 0, %s31
      %s25 = sphi 0, %s23
      %s26 = sphi 0, %s24
      %s27 = sphi 0, %s25
      %s28 = sphi 0, %s26
      %s40 = sphi 0, %s42
      %s43 = sphi 0, %s40
      %s44 = sphi 0, %s43
      %s60 = sphi 0, %s44
      %s64 = sphi 0, %s64
      %s66 = sphi 0, %s64
      %s67 = sphi 0, %s66
      %s81 = sphi 0, %s67
      %s85 = sphi 0, %s85
      %s87 = sphi 0, %s85
      %s88 = sphi 0, %s87
      %s102 = sphi 0, %s88
      %s106 = sphi 0, %s106
      %s108 = sphi 0, %s106
      %s109 = sphi 0, %s108
      %s123 = sphi 0, %s109
      %s127 = sphi 0, %s127
      %s129 = sphi 0, %s127
      %s130 = sphi 0, %s129
      %s144 = sphi 0, %s130
      %s150 = sphi 0, %s152
      %s153 = sphi 0, %s150
      %s154 = sphi 0, %s153
      %s170 = sphi 0, %s154
    $region4: #{tpu_custom_call.1} parent=1 // loop_header_branch
      %19 = sbr.rel (%p17) target = $region8
    $region5: #{tpu_custom_call.1} parent=1 // loop_body
      %s21 = ssub.s32 %s16, 1
      %s22 = ssub.s32 %s16, 2
      %s29 = sadd.s32 1, %s24
      %p30 = scmp.ge.s32.totalorder %s29, 2
      %s31 = scalar_select %p30, 0, %s29
      %s32 = sadd.s32 1, %s23
      %s33 = scalar_select %p30, %s32, %s23
      %p34 = scmp.ge.s32.totalorder %s33, 1
      %s35 = scalar_select %p34, 0, %s33
      %s36 = ssub.s32 %s23, %s35
      %s37 = ssub.s32 %s24, %s31
      %s38 = sor.u32 %s36, %s37
      %p39 = scmp.eq.s32.totalorder %s38, 0
      %s41 = sadd.s32 %s40, 1
      %s42 = scalar_select %p39, %s40, %s41
      %p45 = pneg %p39
      %p46 = scmp.eq.s32.totalorder %s16, 1
      %p47 = por %p45, %p46
      %p48 = scmp.ne.s32.totalorder %s40, %s43
      %p49 = scmp.eq.s32.totalorder %s16, 0
      %p50 = por %p48, %p49
      %p51 = scmp.ne.s32.totalorder %s40, %s43
      %p52 = scmp.eq.s32.totalorder %s21, 1
      %p53 = por %p51, %p52
      %p54 = scmp.ne.s32.totalorder %s43, %s44
      %p55 = scmp.eq.s32.totalorder %s21, 0
      %p56 = por %p54, %p55
      %p57 = scmp.ne.s32.totalorder %s43, %s44
      %p58 = scmp.eq.s32.totalorder %s22, 1
      %p59 = por %p57, %p58
      %p61 = scmp.ne.s32.totalorder %s44, %s60
      %p62 = scmp.eq.s32.totalorder %s22, 0
      %p63 = por %p61, %p62
      %s65 = sadd.s32 %s64, 1
      %p68 = scmp.eq.s32.totalorder %s16, 1
      %p69 = scmp.ne.s32.totalorder %s64, %s66
      %p70 = scmp.eq.s32.totalorder %s16, 0
      %p71 = por %p69, %p70
      %p72 = scmp.ne.s32.totalorder %s64, %s66
      %p73 = scmp.eq.s32.totalorder %s21, 1
      %p74 = por %p72, %p73
      %p75 = scmp.ne.s32.totalorder %s66, %s67
      %p76 = scmp.eq.s32.totalorder %s21, 0
      %p77 = por %p75, %p76
      %p78 = scmp.ne.s32.totalorder %s66, %s67
      %p79 = scmp.eq.s32.totalorder %s22, 1
      %p80 = por %p78, %p79
      %p82 = scmp.ne.s32.totalorder %s67, %s81
      %p83 = scmp.eq.s32.totalorder %s22, 0
      %p84 = por %p82, %p83
      %s86 = sadd.s32 %s85, 1
      %p89 = scmp.eq.s32.totalorder %s16, 1
      %p90 = scmp.ne.s32.totalorder %s85, %s87
      %p91 = scmp.eq.s32.totalorder %s16, 0
      %p92 = por %p90, %p91
      %p93 = scmp.ne.s32.totalorder %s85, %s87
      %p94 = scmp.eq.s32.totalorder %s21, 1
      %p95 = por %p93, %p94
      %p96 = scmp.ne.s32.totalorder %s87, %s88
      %p97 = scmp.eq.s32.totalorder %s21, 0
      %p98 = por %p96, %p97
      %p99 = scmp.ne.s32.totalorder %s87, %s88
      %p100 = scmp.eq.s32.totalorder %s22, 1
      %p101 = por %p99, %p100
      %p103 = scmp.ne.s32.totalorder %s88, %s102
      %p104 = scmp.eq.s32.totalorder %s22, 0
      %p105 = por %p103, %p104
      %s107 = sadd.s32 %s106, 1
      %p110 = scmp.eq.s32.totalorder %s16, 1
      %p111 = scmp.ne.s32.totalorder %s106, %s108
      %p112 = scmp.eq.s32.totalorder %s16, 0
      %p113 = por %p111, %p112
      %p114 = scmp.ne.s32.totalorder %s106, %s108
      %p115 = scmp.eq.s32.totalorder %s21, 1
      %p116 = por %p114, %p115
      %p117 = scmp.ne.s32.totalorder %s108, %s109
      %p118 = scmp.eq.s32.totalorder %s21, 0
      %p119 = por %p117, %p118
      %p120 = scmp.ne.s32.totalorder %s108, %s109
      %p121 = scmp.eq.s32.totalorder %s22, 1
      %p122 = por %p120, %p121
      %p124 = scmp.ne.s32.totalorder %s109, %s123
      %p125 = scmp.eq.s32.totalorder %s22, 0
      %p126 = por %p124, %p125
      %s128 = sadd.s32 %s127, 1
      %p131 = scmp.eq.s32.totalorder %s16, 1
      %p132 = scmp.ne.s32.totalorder %s127, %s129
      %p133 = scmp.eq.s32.totalorder %s16, 0
      %p134 = por %p132, %p133
      %p135 = scmp.ne.s32.totalorder %s127, %s129
      %p136 = scmp.eq.s32.totalorder %s21, 1
      %p137 = por %p135, %p136
      %p138 = scmp.ne.s32.totalorder %s129, %s130
      %p139 = scmp.eq.s32.totalorder %s21, 0
      %p140 = por %p138, %p139
      %p141 = scmp.ne.s32.totalorder %s129, %s130
      %p142 = scmp.eq.s32.totalorder %s22, 1
      %p143 = por %p141, %p142
      %p145 = scmp.ne.s32.totalorder %s130, %s144
      %p146 = scmp.eq.s32.totalorder %s22, 0
      %p147 = por %p145, %p146
      %s148 = ssub.s32 %s23, %s35
      %p149 = scmp.eq.s32.totalorder %s148, 0
      %s151 = sadd.s32 %s150, 1
      %s152 = scalar_select %p149, %s150, %s151
      %p155 = pneg %p149
      %p156 = scmp.eq.s32.totalorder %s16, 1
      %p157 = por %p155, %p156
      %p158 = scmp.ne.s32.totalorder %s150, %s153
      %p159 = scmp.eq.s32.totalorder %s16, 0
      %p160 = por %p158, %p159
      %p161 = scmp.ne.s32.totalorder %s150, %s153
      %p162 = scmp.eq.s32.totalorder %s21, 1
      %p163 = por %p161, %p162
      %p164 = scmp.ne.s32.totalorder %s153, %s154
      %p165 = scmp.eq.s32.totalorder %s21, 0
      %p166 = por %p164, %p165
      %p167 = scmp.ne.s32.totalorder %s153, %s154
      %p168 = scmp.eq.s32.totalorder %s22, 1
      %p169 = por %p167, %p168
      %p171 = scmp.ne.s32.totalorder %s154, %s170
      %p172 = scmp.eq.s32.totalorder %s22, 0
      %p173 = por %p171, %p172
      %p174 = scmp.le.s32.totalorder 1, %s16
      %p175 = scmp.lt.s32.totalorder %s16, 3
      %p176 = pnand %p174, %p175
      %p177 = pneg %p176
      // Predicated region
      $region9: #{tpu_custom_call.1} parent=5 // pred_check
        _
      $region10: #{tpu_custom_call.1} parent=5 // pred_check_branch
        %179 = sbr.rel (%p176) target = $region12
      $region11: #{tpu_custom_call.1} parent=5 // pred_region
        %s180 = ssub.s32 %s16, 1
        // Predicated region
        $region13: #{tpu_custom_call.1} parent=11 // pred_check
          %p181 = pneg %p77
        $region14: #{tpu_custom_call.1} parent=11 // pred_check_branch
          %183 = sbr.rel (%p181) target = $region16
        $region15: #{tpu_custom_call.1} parent=11 // pred_region
          %s185 = ssub.s32 256, 256
          %186 = vsyncadd [#allocation7], %s185
          %s187 = sshll.u32 [#allocation6], 4
          %s188 = int_to_ptr.vmem [resolvable:$true] %s187
          %193 = dma.hbm_to_vmem [thread:$0]  %s1, 256, %s188, [#allocation7], 128, 128, 8
        $region16: #{tpu_custom_call.1} parent=11 // pred_fallthru
          _
        // Predicated region
        $region17: #{tpu_custom_call.1} parent=11 // pred_check
          %p194 = pneg %p98
        $region18: #{tpu_custom_call.1} parent=11 // pred_check_branch
          %196 = sbr.rel (%p194) target = $region20
        $region19: #{tpu_custom_call.1} parent=11 // pred_region
          _
        $region20: #{tpu_custom_call.1} parent=11 // pred_fallthru
          _
        // Predicated region
        $region21: #{tpu_custom_call.1} parent=11 // pred_check
          %p197 = pneg %p119
        $region22: #{tpu_custom_call.1} parent=11 // pred_check_branch
          %199 = sbr.rel (%p197) target = $region24
        $region23: #{tpu_custom_call.1} parent=11 // pred_region
          %s201 = ssub.s32 2048, 2048
          %202 = vsyncadd [#allocation7], %s201
          %s203 = sshll.u32 [#allocation8], 4
          %s204 = int_to_ptr.vmem [resolvable:$true] %s203
          %209 = dma.hbm_to_vmem [thread:$0]  %s3, 2048, %s204, [#allocation7], 128, 128, 8
        $region24: #{tpu_custom_call.1} parent=11 // pred_fallthru
          _
        // Predicated region
        $region25: #{tpu_custom_call.1} parent=11 // pred_check
          %p210 = pneg %p140
        $region26: #{tpu_custom_call.1} parent=11 // pred_check_branch
          %212 = sbr.rel (%p210) target = $region28
        $region27: #{tpu_custom_call.1} parent=11 // pred_region
          _
        $region28: #{tpu_custom_call.1} parent=11 // pred_fallthru
          _
      $region12: #{tpu_custom_call.1} parent=5 // pred_fallthru
        _
      %p213 = scmp.lt.s32.totalorder %s16, 2
      // Predicated region
      $region29: #{tpu_custom_call.1} parent=5 // pred_check
        %p214 = pneg %p213
      $region30: #{tpu_custom_call.1} parent=5 // pred_check_branch
        %216 = sbr.rel (%p214) target = $region32
      $region31: #{tpu_custom_call.1} parent=5 // pred_region
        // Predicated region
        $region33: #{tpu_custom_call.1} parent=31 // pred_check
          %p217 = pneg %p50
        $region34: #{tpu_custom_call.1} parent=31 // pred_check_branch
          %219 = sbr.rel (%p217) target = $region36
        $region35: #{tpu_custom_call.1} parent=31 // pred_region
          %s220 = sand.u32 %s40, 1
          %s221 = scalar_lea.sflag [#allocation4], %s220
          %s222 = sand.u32 %s40, 1
          %s223 = smul.addr %s222, 32
          %s224 = scalar_lea.vmem [#allocation3], %s223
          %s225 = smul.u32 2, %s23
          %s227 = ssub.s32 512, 512
          %228 = vsyncadd %s221, %s227
          %s229 = smul.addr %s225, 4
          %s230 = sadd.s32 %s24, %s229
          %s231 = smul.addr %s230, 128
          %s232 = scalar_lea.hbm %s0, %s231
          %s233 = sshll.u32 %s224, 4
          %s234 = int_to_ptr.vmem [resolvable:$true] %s233
          %239 = dma.hbm_to_vmem [thread:$0]  %s232, 512, %s234, %s221, 256, 128, 8
        $region36: #{tpu_custom_call.1} parent=31 // pred_fallthru
          _
      $region32: #{tpu_custom_call.1} parent=5 // pred_fallthru
        _
      %p240 = scmp.le.s32.totalorder 1, %s16
      %p241 = scmp.lt.s32.totalorder %s16, 3
      %p242 = pnand %p240, %p241
      %p243 = pneg %p242
      // Predicated region
      $region37: #{tpu_custom_call.1} parent=5 // pred_check
        _
      $region38: #{tpu_custom_call.1} parent=5 // pred_check_branch
        %245 = sbr.rel (%p242) target = $region40
      $region39: #{tpu_custom_call.1} parent=5 // pred_region
        %s246 = ssub.s32 %s16, 1
        %s247 = sand.u32 %s43, 1
        %s248 = scalar_lea.sflag [#allocation4], %s247
        %s249 = sand.u32 %s43, 1
        %s250 = smul.addr %s249, 32
        %s251 = scalar_lea.vmem [#allocation3], %s250
        // Predicated region
        $region41: #{tpu_custom_call.1} parent=39 // pred_check
          %p252 = pneg %p56
        $region42: #{tpu_custom_call.1} parent=39 // pred_check_branch
          %254 = sbr.rel (%p252) target = $region44
        $region43: #{tpu_custom_call.1} parent=39 // pred_region
          %255 = dma.done %s248, 512
        $region44: #{tpu_custom_call.1} parent=39 // pred_fallthru
          _
        // Predicated region
        $region45: #{tpu_custom_call.1} parent=39 // pred_check
          %p256 = pneg %p77
        $region46: #{tpu_custom_call.1} parent=39 // pred_check_branch
          %258 = sbr.rel (%p256) target = $region48
        $region47: #{tpu_custom_call.1} parent=39 // pred_region
          %259 = dma.done [#allocation7], 256
        $region48: #{tpu_custom_call.1} parent=39 // pred_fallthru
          _
        // Predicated region
        $region49: #{tpu_custom_call.1} parent=39 // pred_check
          %p260 = pneg %p119
        $region50: #{tpu_custom_call.1} parent=39 // pred_check_branch
          %262 = sbr.rel (%p260) target = $region52
        $region51: #{tpu_custom_call.1} parent=39 // pred_region
          %263 = dma.done [#allocation7], 2048
        $region52: #{tpu_custom_call.1} parent=39 // pred_fallthru
          _
        %s264 = sand.u32 %s43, 1
        %s265 = scalar_lea.sflag [#allocation4], %s264
        %s266 = sand.u32 %s43, 1
        %s267 = smul.addr %s266, 32
        %s268 = scalar_lea.vmem [#allocation3], %s267
        %p269 = pneg %p56
        %p270 = pneg %p53
        %p271 = pneg %p77
        %p272 = pneg %p74
        %p273 = pneg %p98
        %p274 = pneg %p95
        %p275 = pneg %p119
        %p276 = pneg %p116
        %p277 = pneg %p140
        %p278 = pneg %p137
        %p279 = pneg %p166
        %p280 = pneg %p163
        %s281 = smul.u32 2, %s25
        %s282 = smul.u32 2, %s25
        %p283 = scmp.eq.s32.totalorder %s26, 0
        // Predicated region
        $region53: #{tpu_custom_call.1} parent=39 // pred_check
          %p284 = pneg %p283
        $region54: #{tpu_custom_call.1} parent=39 // pred_check_branch
          %286 = sbr.rel (%p284) target = $region56
        $region55: #{tpu_custom_call.1} parent=39 // pred_region
          %vm287 = vcmask 123904
          %288 = vst.msk [vmem:[#allocation2] sm:$0x3] %vm287, 0.0
        $region56: #{tpu_custom_call.1} parent=39 // pred_fallthru
          _
        %v289 = vld [vmem:[%s251] sm:$0xff]
        %v290 = vld [vmem:[%s251 + $0x8] sm:$0xff]
        %v291 = vld [vmem:[%s251 + $0x10] sm:$0xff]
        %v292 = vld [vmem:[%s251 + $0x18] sm:$0xff]
        %v293 = vld [vmem:[#allocation2] sm:$0x3]
        %294 = vadd.xlane.f32.xlu0 %v289
        %v295 = vpop.xlane.xlu0 %294
        %296 = vadd.xlane.f32.xlu0 %v290
        %v297 = vpop.xlane.xlu0 %296
        %298 = vadd.xlane.f32.xlu0 %v291
        %v299 = vpop.xlane.xlu0 %298
        %300 = vadd.xlane.f32.xlu0 %v292
        %v301 = vpop.xlane.xlu0 %300
        %v306 = vlaneseq
        %v307 = vand.u32 %v306, 127
        %v308 = vlaneseq
        %v309 = vshrl.u32 %v308, 7
        %v310 = vsub.s32 %v307, %v309
        %v311 = vrot.slane %v295, %v310
        %v312 = vadd.s32 %v307, 4294967288
        %v313 = vlaneseq
        %v314 = vshrl.u32 %v313, 7
        %v315 = vsub.s32 %v312, %v314
        %v316 = vrot.slane %v297, %v315
        %vm317 = vcmask 130112
        %v318 = vsel %vm317, %v316, %v311
        %v319 = vlaneseq
        %v320 = vshrl.u32 %v319, 7
        %v321 = vsub.s32 %v307, %v320
        %v322 = vrot.slane %v299, %v321
        %v323 = vlaneseq
        %v324 = vshrl.u32 %v323, 7
        %v325 = vsub.s32 %v312, %v324
        %v326 = vrot.slane %v301, %v325
        %v327 = vsel %vm317, %v326, %v322
        %vm328 = vcmask 1041409
        %v329 = vsel %vm328, %v327, %v318
        %v331 = vadd.f32 %v293, %v329
        %vm332 = vcmask 123904
        %333 = vst.msk [vmem:[#allocation2] sm:$0x3] %vm332, %v331
        %p334 = scmp.eq.s32.totalorder %s26, 1
        // Predicated region
        $region57: #{tpu_custom_call.1} parent=39 // pred_check
          %p335 = pneg %p334
        $region58: #{tpu_custom_call.1} parent=39 // pred_check_branch
          %337 = sbr.rel (%p335) target = $region60
        $region59: #{tpu_custom_call.1} parent=39 // pred_region
          %v338 = vld [vmem:[#allocation2] sm:$0x3]
          %v339 = vmul.f32 %v338, 0.00390625
          %v340 = vld [vmem:[%s2] sm:$0x7]
          %v341 = vld [vmem:[#allocation6] sm:$0xff]
          %v342 = vld [vmem:[#allocation6 + $0x8] sm:$0xff]
          %v343 = vlaneseq
          %v344 = vshrl.u32 %v343, 7
          %v345 = vsub.s32 0, %v344
          %v346 = vrot.slane %v340, %v345
          %vm347 = vcmask 130048
          %v349 = vsel %vm347, %v339, 0
          %351 = vmatprep.subr.mxu0 0.0
          %352 = vmatpush1.msra.mxu0 %v341
          %353 = vmatprep.subr.mxu0 0.0
          %354 = vmatpush1.msra.mxu0 %v342
          %355 = vmatprep.subr.mxu0 0.0
          %356 = vmatpush1.msra.mxu0 0.0
          %357 = vmatprep.subr.mxu0 0.0
          %358 = vmatpush1.msra.mxu0 0.0
          %359 = vmatprep.subr.mxu0 0.0
          %360 = vmatpush1.msra.mxu0 0.0
          %361 = vmatprep.subr.mxu0 0.0
          %362 = vmatpush1.msra.mxu0 0.0
          %363 = vmatprep.subr.mxu0 0.0
          %364 = vmatpush1.msra.mxu0 0.0
          %365 = vmatprep.subr.mxu0 0.0
          %366 = vmatpush1.msra.mxu0 0.0
          %367 = vmatprep.subr.mxu0 0.0
          %368 = vmatpush1.msra.mxu0 0.0
          %369 = vmatprep.subr.mxu0 0.0
          %370 = vmatpush1.msra.mxu0 0.0
          %371 = vmatprep.subr.mxu0 0.0
          %372 = vmatpush1.msra.mxu0 0.0
          %373 = vmatprep.subr.mxu0 0.0
          %374 = vmatpush1.msra.mxu0 0.0
          %375 = vmatprep.subr.mxu0 0.0
          %376 = vmatpush1.msra.mxu0 0.0
          %377 = vmatprep.subr.mxu0 0.0
          %378 = vmatpush1.msra.mxu0 0.0
          %379 = vmatprep.subr.mxu0 0.0
          %380 = vmatpush1.msra.mxu0 0.0
          %381 = vmatprep.subr.mxu0 0.0
          %382 = vmatpush1.msra.mxu0 0.0
          %383 = vmatprep.subr.mxu0 0.0
          %384 = vmatpush1.msra.mxu0 0.0
          %385 = vmatprep.subr.mxu0 0.0
          %386 = vmatpush1.msra.mxu0 0.0
          %387 = vmatprep.subr.mxu0 0.0
          %388 = vmatpush1.msra.mxu0 0.0
          %389 = vmatprep.subr.mxu0 0.0
          %390 = vmatpush1.msra.mxu0 0.0
          %391 = vmatprep.subr.mxu0 0.0
          %392 = vmatpush1.msra.mxu0 0.0
          %393 = vmatprep.subr.mxu0 0.0
          %394 = vmatpush1.msra.mxu0 0.0
          %395 = vmatprep.subr.mxu0 0.0
          %396 = vmatpush1.msra.mxu0 0.0
          %397 = vmatprep.subr.mxu0 0.0
          %398 = vmatpush1.msra.mxu0 0.0
          %399 = vmatprep.subr.mxu0 0.0
          %400 = vmatpush1.msra.mxu0 0.0
          %401 = vmatprep.subr.mxu0 0.0
          %402 = vmatpush1.msra.mxu0 0.0
          %403 = vmatprep.subr.mxu0 0.0
          %404 = vmatpush1.msra.mxu0 0.0
          %405 = vmatprep.subr.mxu0 0.0
          %406 = vmatpush1.msra.mxu0 0.0
          %407 = vmatprep.subr.mxu0 0.0
          %408 = vmatpush1.msra.mxu0 0.0
          %409 = vmatprep.subr.mxu0 0.0
          %410 = vmatpush1.msra.mxu0 0.0
          %411 = vmatprep.subr.mxu0 0.0
          %412 = vmatpush1.msra.mxu0 0.0
          %413 = vmatprep.subr.mxu0 0.0
          %414 = vmatpush1.msra.mxu0 0.0
          %415 = vmatprep.mubr.f32.mxu0 0.0
          %416 = vmatmul.mubr.f32.gmra.mrb[0].mxu0 %v349
          %v417 = vpop.f32.mrb[0].mxu0
          %v418 = vadd.f32 %v346, %v417
          %v419 = vpop.f32.mrb[0].mxu0
          %420 = vdwg.mxu0
          %vm421 = vcmask 1041408
          %v422 = vsel %vm421, %v418, 0.0
          %423 = vadd.xlane.f32.xlu0 %v422
          %v424 = vpop.xlane.xlu0 %423
          %v425 = vmul.f32 %v424, 0.03125
          %v426 = vsub.f32 %v418, %v425
          %vm427 = vcmp.lt.s32.totalorder %v307, 32
          %v428 = vsel %vm427, %v426, 0.0
          %v429 = vmul.f32 %v428, %v428
          %v430 = vsel %vm421, %v429, 0.0
          %431 = vadd.xlane.f32.xlu0 %v430
          %v432 = vpop.xlane.xlu0 %431
          %v433 = vmul.f32 %v432, 0.03125
          %v434 = vadd.f32 %v433, 1e-05
          %v435 = vrsqrt.pop %v434
          %v436 = vmul.f32 %v426, %v435
          %v437 = vlaneseq
          %v438 = vshrl.u32 %v437, 7
          %v439 = vsub.s32 1, %v438
          %v440 = vrot.slane %v340, %v439
          %v441 = vmul.f32 %v436, %v440
          %v442 = vlaneseq
          %v443 = vshrl.u32 %v442, 7
          %v444 = vsub.s32 2, %v443
          %v445 = vrot.slane %v340, %v444
          %v446 = vadd.f32 %v441, %v445
          %v447 = vmax.f32 %v446, 0.0
          %v448 = vld [vmem:[#allocation8] sm:$0xff]
          %v449 = vld [vmem:[#allocation8 + $0x8] sm:$0xff]
          %v450 = vld [vmem:[#allocation8 + $0x10] sm:$0xff]
          %v451 = vld [vmem:[#allocation8 + $0x18] sm:$0xff]
          %v452 = vld [vmem:[#allocation8 + $0x20] sm:$0xff]
          %v453 = vld [vmem:[#allocation8 + $0x28] sm:$0xff]
          %v454 = vld [vmem:[#allocation8 + $0x30] sm:$0xff]
          %v455 = vld [vmem:[#allocation8 + $0x38] sm:$0xff]
          %v456 = vld [vmem:[#allocation8 + $0x40] sm:$0xff]
          %v457 = vld [vmem:[#allocation8 + $0x48] sm:$0xff]
          %v458 = vld [vmem:[#allocation8 + $0x50] sm:$0xff]
          %v459 = vld [vmem:[#allocation8 + $0x58] sm:$0xff]
          %v460 = vld [vmem:[#allocation8 + $0x60] sm:$0xff]
          %v461 = vld [vmem:[#allocation8 + $0x68] sm:$0xff]
          %v462 = vld [vmem:[#allocation8 + $0x70] sm:$0xff]
          %v463 = vld [vmem:[#allocation8 + $0x78] sm:$0xff]
          %v464 = vld [vmem:[%s4] sm:$0x1]
          %v466 = vlaneseq
          %v467 = vshrl.u32 %v466, 7
          %v468 = vsub.s32 0, %v467
          %v469 = vrot.slane %v464, %v468
          %471 = vmatprep.subr.mxu0 0.0
          %472 = vmatpush1.msra.mxu0 %v448
          %473 = vmatprep.subr.mxu0 0.0
          %474 = vmatpush1.msra.mxu0 %v449
          %475 = vmatprep.subr.mxu0 0.0
          %476 = vmatpush1.msra.mxu0 %v450
          %477 = vmatprep.subr.mxu0 0.0
          %478 = vmatpush1.msra.mxu0 %v451
          %479 = vmatprep.subr.mxu0 0.0
          %480 = vmatpush1.msra.mxu0 %v452
          %481 = vmatprep.subr.mxu0 0.0
          %482 = vmatpush1.msra.mxu0 %v453
          %483 = vmatprep.subr.mxu0 0.0
          %484 = vmatpush1.msra.mxu0 %v454
          %485 = vmatprep.subr.mxu0 0.0
          %486 = vmatpush1.msra.mxu0 %v455
          %487 = vmatprep.subr.mxu0 0.0
          %488 = vmatpush1.msra.mxu0 %v456
          %489 = vmatprep.subr.mxu0 0.0
          %490 = vmatpush1.msra.mxu0 %v457
          %491 = vmatprep.subr.mxu0 0.0
          %492 = vmatpush1.msra.mxu0 %v458
          %493 = vmatprep.subr.mxu0 0.0
          %494 = vmatpush1.msra.mxu0 %v459
          %495 = vmatprep.subr.mxu0 0.0
          %496 = vmatpush1.msra.mxu0 %v460
          %497 = vmatprep.subr.mxu0 0.0
          %498 = vmatpush1.msra.mxu0 %v461
          %499 = vmatprep.subr.mxu0 0.0
          %500 = vmatpush1.msra.mxu0 %v462
          %501 = vmatprep.subr.mxu0 0.0
          %502 = vmatpush1.msra.mxu0 %v463
          %503 = vmatprep.subr.mxu0 0.0
          %504 = vmatpush1.msra.mxu0 0.0
          %505 = vmatprep.subr.mxu0 0.0
          %506 = vmatpush1.msra.mxu0 0.0
          %507 = vmatprep.subr.mxu0 0.0
          %508 = vmatpush1.msra.mxu0 0.0
          %509 = vmatprep.subr.mxu0 0.0
          %510 = vmatpush1.msra.mxu0 0.0
          %511 = vmatprep.subr.mxu0 0.0
          %512 = vmatpush1.msra.mxu0 0.0
          %513 = vmatprep.subr.mxu0 0.0
          %514 = vmatpush1.msra.mxu0 0.0
          %515 = vmatprep.subr.mxu0 0.0
          %516 = vmatpush1.msra.mxu0 0.0
          %517 = vmatprep.subr.mxu0 0.0
          %518 = vmatpush1.msra.mxu0 0.0
          %519 = vmatprep.subr.mxu0 0.0
          %520 = vmatpush1.msra.mxu0 0.0
          %521 = vmatprep.subr.mxu0 0.0
          %522 = vmatpush1.msra.mxu0 0.0
          %523 = vmatprep.subr.mxu0 0.0
          %524 = vmatpush1.msra.mxu0 0.0
          %525 = vmatprep.subr.mxu0 0.0
          %526 = vmatpush1.msra.mxu0 0.0
          %527 = vmatprep.subr.mxu0 0.0
          %528 = vmatpush1.msra.mxu0 0.0
          %529 = vmatprep.subr.mxu0 0.0
          %530 = vmatpush1.msra.mxu0 0.0
          %531 = vmatprep.subr.mxu0 0.0
          %532 = vmatpush1.msra.mxu0 0.0
          %533 = vmatprep.subr.mxu0 0.0
          %534 = vmatpush1.msra.mxu0 0.0
          %535 = vmatprep.mubr.f32.mxu0 0.0
          %536 = vmatmul.mubr.f32.gmra.mrb[0].mxu0 %v447
          %v537 = vpop.f32.mrb[0].mxu0
          %v538 = vadd.f32 %v469, %v537
          %v539 = vpop.f32.mrb[0].mxu0
          %540 = vdwg.mxu0
          %v543 = vunpack.c.l.s4 1966171168
          %v544 = vunpack.c.0.s8 %v543
          %v545 = vlaneseq
          %v546 = vshrl.u32 %v545, 7
          %v547 = vsub.s32 %v544, %v546
          %v548 = vrot.slane %v538, %v547
          %v549 = vcombine.high %v548, %v548
          %v551 = vunpack.c.l.s4 1966171168
          %v552 = vunpack.c.0.s8 %v551
          %v553 = vlaneseq
          %v554 = vshrl.u32 %v553, 7
          %v555 = vsub.s32 %v552, %v554
          %v556 = vrot.slane %v548, %v555
          %v558 = vunpack.c.l.s4 1966171168
          %v559 = vunpack.c.0.s8 %v558
          %v560 = vlaneseq
          %v561 = vshrl.u32 %v560, 7
          %v562 = vsub.s32 %v559, %v561
          %v563 = vrot.slane %v549, %v562
          %566 = vst [vmem:[#allocation9] sm:$0x1] %v556
          %567 = vst [vmem:[#allocation9 + $0x1] sm:$0x1] %v563
        $region60: #{tpu_custom_call.1} parent=39 // pred_fallthru
          _
        // Predicated region
        $region61: #{tpu_custom_call.1} parent=39 // pred_check
          %p568 = pneg %p163
        $region62: #{tpu_custom_call.1} parent=39 // pred_check_branch
          %570 = sbr.rel (%p568) target = $region64
        $region63: #{tpu_custom_call.1} parent=39 // pred_region
          %s571 = smul.u32 2, %s25
          %s573 = ssub.s32 32, 32
          %574 = vsyncadd [#allocation5], %s573
          %s575 = smul.addr %s571, 16
          %s576 = scalar_lea.hbm %s5, %s575
          %s577 = sshll.u32 [#allocation9], 4
          %s578 = int_to_ptr.vmem [resolvable:$true] %s577
          %583 = dma.vmem_to_hbm [thread:$0]  %s578, 32, %s576, [#allocation5], 16, 16, 1
        $region64: #{tpu_custom_call.1} parent=39 // pred_fallthru
          _
        // Predicated region
        $region65: #{tpu_custom_call.1} parent=39 // pred_check
          %p584 = pneg %p163
        $region66: #{tpu_custom_call.1} parent=39 // pred_check_branch
          %586 = sbr.rel (%p584) target = $region68
        $region67: #{tpu_custom_call.1} parent=39 // pred_region
          %587 = dma.done [#allocation5], 32
        $region68: #{tpu_custom_call.1} parent=39 // pred_fallthru
          _
      $region40: #{tpu_custom_call.1} parent=5 // pred_fallthru
        _
      %p588 = scmp.le.s32.totalorder 2, %s16
      // Predicated region
      $region69: #{tpu_custom_call.1} parent=5 // pred_check
        %p589 = pneg %p588
      $region70: #{tpu_custom_call.1} parent=5 // pred_check_branch
        %591 = sbr.rel (%p589) target = $region72
      $region71: #{tpu_custom_call.1} parent=5 // pred_region
        %s592 = ssub.s32 %s16, 2
      $region72: #{tpu_custom_call.1} parent=5 // pred_fallthru
        _
    $region6: #{tpu_custom_call.1} parent=1 // loop_footer
      %s20 = sadd.s32 1, %s16
    $region7: #{tpu_custom_call.1} parent=1 // loop_footer_branch
      %15 = sbr.rel target = $region3
    $region8: #{tpu_custom_call.1} parent=1 // loop_exit
      _
    %593 = vsyncpa [#allocation4], 1
    %s594 = scalar_lea.sflag [#allocation4], 1
    %595 = vsyncpa %s594, 1
    %596 = vsyncpa [#allocation7], 1
    %597 = vsyncpa [#allocation5], 1
    %s598 = scalar_lea.sflag [#allocation5], 1
    %599 = vsyncpa %s598, 1

</llo_original>
